<compile_context>
chip_gen: v6e
topology: v6e:2x2x1
jax: 0.10.0
libtpu: 0.0.40
codegen_flags: <defaults>
</compile_context>

<pallas_src>
import functools
import math

import jax
import jax.numpy as jnp
from jax.experimental import pallas as pl
from jax.experimental.pallas import tpu as pltpu

_LANES = 128
_SUBLANES = 8
_BLOCK_ELEMS = _SUBLANES * _LANES           # one f32 vreg worth of elements
_MAX_TILE_BYTES = 4 * 1024 * 1024           # per input buffer; x2 double-buffered = 8 MiB
_MIN_KERNEL_ELEMS = _BLOCK_ELEMS            # below this, plain XLA is cheaper
_LN2 = math.log(2.0)

# Grid-dimension semantics (defensive getattr keeps older jax versions working).
_ARBITRARY = getattr(pltpu, "ARBITRARY", "arbitrary")
_CORE_PARALLEL = getattr(pltpu, "CORE_PARALLEL", "parallel")


def _tensorcores_per_device():
    """TensorCores addressable by one pallas_call grid.

    Only v7x-class parts (2 TCs/chip) benefit from the leading core-split axis;
    v5e/v6e are single-TC, so the grid stays 1-core there (no duplicate blocks,
    no masking overhead)."""
    try:
        kind = jax.devices()[0].device_kind.lower()
    except Exception:
        return 1
    return 2 if ("v7" in kind or "tpu7" in kind) else 1


def _bce_partial_kernel(x_ref, out_ref, *, target_val, tile_rows,
                        steps_per_core, num_steps, valid_rows,
                        needs_tail_mask, needs_skip):
    """Accumulate BCE-with-logits loss of one (tile_rows, 128) tile into a
    resident (8, 128) partial-sum output block (one block per core index)."""
    c = pl.program_id(0)
    i = pl.program_id(1)
    step = c * steps_per_core + i          # logical block index along the row axis

    @pl.when(i == 0)
    def _():
        out_ref[...] = jnp.zeros_like(out_ref)

    def accumulate(mask_tail_rows):
        x = x_ref[...].astype(jnp.float32)
        # Numerically stable BCE-with-logits against the constant label.
        # Exactly 2 transcendentals / element (exp + log1p) — the compute floor.
        log_term = jnp.log1p(jnp.exp(-jnp.abs(x)))
        if target_val == 1.0:
            loss = jnp.maximum(-x, 0.0) + log_term        # max(x,0) - x == relu(-x)
        elif target_val == 0.0:
            loss = jnp.maximum(x, 0.0) + log_term
        else:
            loss = jnp.maximum(x, 0.0) - x * jnp.float32(target_val) + log_term
        if mask_tail_rows:
            # Only the last logical block can contain out-of-range (garbage) rows.
            row = jax.lax.broadcasted_iota(jnp.int32, (tile_rows, _LANES), 0)
            loss = jnp.where(step * tile_rows + row < valid_rows, loss, 0.0)
        # Sublane-folded VPU accumulate into the lane-dense resident output block.
        out_ref[...] += loss.reshape(tile_rows // _SUBLANES, _SUBLANES, _LANES).sum(axis=0)

    if needs_tail_mask:
        @pl.when(step == num_steps - 1)
        def _():
            accumulate(True)

        @pl.when(step < num_steps - 1)
        def _():
            accumulate(False)
    elif needs_skip:
        # Duplicate (clamped) steps of the last core: skip compute entirely.
        @pl.when(step < num_steps)
        def _():
            accumulate(False)
    else:
        accumulate(False)


def _bce_with_logits_padded_sum(x2d, target_val):
    """x2d: (rows, 128) with rows % 8 == 0, native dtype. Returns the f32 sum of
    BCE-with-logits losses over ALL rows*128 elements (including zero padding)."""
    rows, lanes = x2d.shape
    assert lanes == _LANES and rows % _SUBLANES == 0
    itemsize = jnp.dtype(x2d.dtype).itemsize

    # Largest lane-dense tile that keeps the double-buffered input <= 8 MiB:
    # amortizes the ~0.35 us per-grid-step overhead and fits v5e's 16 MiB
    # default scoped VMEM as well as v6e/v7x defaults.
    max_rows = _MAX_TILE_BYTES // (_LANES * itemsize)
    tile_rows = min(rows, max_rows)                 # both are multiples of 8
    num_steps = pl.cdiv(rows, tile_rows)

    n_cores = min(_tensorcores_per_device(), num_steps)
    steps_per_core = pl.cdiv(num_steps, n_cores)
    needs_skip = n_cores * steps_per_core > num_steps
    needs_tail_mask = rows % tile_rows != 0

    kernel = functools.partial(
        _bce_partial_kernel,
        target_val=float(target_val),
        tile_rows=tile_rows,
        steps_per_core=steps_per_core,
        num_steps=num_steps,
        valid_rows=rows,
        needs_tail_mask=needs_tail_mask,
        needs_skip=needs_skip,
    )

    if needs_skip:
        # Clamp so overflow steps of the last core never issue an OOB DMA;
        # their compute is skipped inside the kernel.
        def in_map(c, i):
            return (jnp.minimum(c * steps_per_core + i, num_steps - 1), 0)
    else:
        def in_map(c, i):
            return (c * steps_per_core + i, 0)

    n_elem = rows * _LANES
    cost = pl.CostEstimate(
        flops=6 * n_elem,
        transcendentals=2 * n_elem,
        bytes_accessed=n_elem * itemsize + n_cores * _SUBLANES * _LANES * 4,
    )

    partials = pl.pallas_call(
        kernel,
        out_shape=jax.ShapeDtypeStruct((n_cores * _SUBLANES, _LANES), jnp.float32),
        grid=(n_cores, steps_per_core),
        in_specs=[pl.BlockSpec((tile_rows, _LANES), in_map)],
        out_specs=pl.BlockSpec((_SUBLANES, _LANES), lambda c, i: (c, 0)),
        compiler_params=pltpu.CompilerParams(
            dimension_semantics=(
                _CORE_PARALLEL if n_cores > 1 else _ARBITRARY,
                _ARBITRARY,
            )),
        cost_estimate=cost,
    )(x2d)
    # Tiny (<= 2048-element) final cross-lane reduce left to XLA.
    return jnp.sum(partials)


class AdversarialLoss:
    """JAX/Pallas port of the PyTorch AdversarialLoss module (BCE-with-logits
    path, which is what the PyTorch module applies for every gan_type)."""

    def __init__(self, gan_type, real_label_val=1.0, fake_label_val=0.0,
                 size_average=True):
        self.gan_type = gan_type.lower()
        self.real_label_val = float(real_label_val)
        self.fake_label_val = float(fake_label_val)
        self.size_average = size_average

    def __call__(self, x, target_is_real):
        # target_is_real must be a static Python bool (as in the PyTorch module).
        target_val = self.real_label_val if target_is_real else self.fake_label_val
        n_elem = x.size

        if n_elem < _MIN_KERNEL_ELEMS:
            # Kernel-launch + single-grid-step overhead dominates: use plain XLA.
            xf = jnp.reshape(x, (-1,)).astype(jnp.float32)
            loss = (jnp.maximum(xf, 0.0) - xf * jnp.float32(target_val)
                    + jnp.log1p(jnp.exp(-jnp.abs(xf))))
            total = jnp.sum(loss)
            if self.size_average:
                return total / jnp.float32(n_elem)
            return total

        flat = jnp.reshape(x, (-1,))       # native dtype; cast happens in-kernel
        pad = (-n_elem) % _BLOCK_ELEMS
        if pad:
            # TODO(synk): for very large ragged inputs, feed the unpadded flat
            # array with 1-D blocks instead of this zero-pad copy.
            flat = jnp.pad(flat, (0, pad))
        x2d = flat.reshape(-1, _LANES)

        total = _bce_with_logits_padded_sum(x2d, target_val)
        if pad:
            # Every zero pad element contributes exactly log(2), independent of
            # the label, so the correction is a compile-time constant (no mask).
            total = total - jnp.float32(pad * _LN2)
        if self.size_average:
            return total / jnp.float32(n_elem)
        return total


def _reference_loss(x, target_val, size_average=True):
    x = x.astype(jnp.float32)
    loss = jnp.maximum(x, 0.0) - x * target_val + jnp.log1p(jnp.exp(-jnp.abs(x)))
    return jnp.mean(loss) if size_average else jnp.sum(loss)


if __name__ == "__main__":
    key = jax.random.PRNGKey(0)
    k1, k2, k3 = jax.random.split(key, 3)

    adv_loss = AdversarialLoss(gan_type="vanilla",
                               real_label_val=1.0,
                               fake_label_val=0.0,
                               size_average=True)

    # 1) Typical discriminator logits, NCHW (2, 4, 16, 16) -> 2048 elements.
    x = jax.random.normal(k1, (2, 4, 16, 16), dtype=jnp.float32) * 2.0
    # 2) Ragged element count (1155, not a multiple of 8*128): pad + log2 fixup.
    x_ragged = jax.random.normal(k2, (3, 5, 7, 11), dtype=jnp.float32) * 1.5
    # 3) Large enough that rows % tile_rows != 0: exercises the tail-row mask.
    x_big = jax.random.normal(k3, (1, 8, 360, 400), dtype=jnp.float32)
    # 4) bf16 logits: exercises the in-kernel cast path.
    x_bf16 = x.astype(jnp.bfloat16)
    # 5) Tiny input: exercises the plain-XLA fallback.
    x_tiny = jax.random.normal(k1, (2, 3), dtype=jnp.float32)

    checks = [
        (x, True), (x, False),
        (x_ragged, True), (x_ragged, False),
        (x_big, True),
        (x_bf16, False),
        (x_tiny, True),
    ]
    for inp, is_real in checks:
        got = adv_loss(inp, target_is_real=is_real)
        jax.block_until_ready(got)
        want = _reference_loss(inp, 1.0 if is_real else 0.0)
        assert jnp.allclose(got, want, rtol=1e-4, atol=1e-6), (
            f"mismatch shape={inp.shape} dtype={inp.dtype} real={is_real}: "
            f"{got} vs {want}")

    print("KERNEL_OK")
</pallas_src>

<mosaic_0001>
module attributes {stable_mosaic.version = 11 : i64} {
  func.func @_bce_partial_kernel(%arg0: i32, %arg1: i32, %arg2: memref<16x128xf32, #tpu.memory_space<vmem>>, %arg3: memref<8x128xf32, #tpu.memory_space<vmem>>) attributes {dimension_semantics = [#tpu.dimension_semantics<arbitrary>, #tpu.dimension_semantics<arbitrary>], iteration_bounds = array<i64: 1, 1>, scalar_prefetch = 0 : i64, scratch_operands = 0 : i64, tpu.core_type = #tpu.core_type<tc>, window_params = [{transform_indices = @transform_0, window_bounds = array<i64: 16, 128>}, {transform_indices = @transform_1, window_bounds = array<i64: 8, 128>}]} {
    %c0_i32 = arith.constant 0 : i32
    %0 = arith.cmpi eq, %arg1, %c0_i32 : i32
    %1 = arith.extui %0 : i1 to i32
    %c0_i32_0 = arith.constant 0 : i32
    %2 = arith.cmpi ne, %1, %c0_i32_0 : i32
    scf.if %2 {
      %cst_9 = arith.constant 0.000000e+00 : f32
      %19 = vector.broadcast %cst_9 : f32 to vector<8x128xf32>
      %c0_10 = arith.constant 0 : index
      %c0_11 = arith.constant 0 : index
      %20 = vector.load %arg3[%c0_10, %c0_11] : memref<8x128xf32, #tpu.memory_space<vmem>>, vector<8x128xf32>
      tpu.vector_store %arg3[%c0_10, %c0_11], %19 {strides = array<i32>} : memref<8x128xf32, #tpu.memory_space<vmem>>, vector<8x128xf32>,
    } else {
    }
    %c0 = arith.constant 0 : index
    %c0_1 = arith.constant 0 : index
    %3 = vector.load %arg2[%c0, %c0_1] : memref<16x128xf32, #tpu.memory_space<vmem>>, vector<16x128xf32>
    %4 = math.absf %3 : vector<16x128xf32>
    %cst = arith.constant 0.000000e+00 : f32
    %5 = vector.broadcast %cst : f32 to vector<16x128xf32>
    %6 = arith.subf %5, %4 : vector<16x128xf32>
    %7 = math.exp %6 : vector<16x128xf32>
    %8 = math.log1p %7 : vector<16x128xf32>
    %cst_2 = arith.constant 0.000000e+00 : f32
    %9 = vector.broadcast %cst_2 : f32 to vector<16x128xf32>
    %10 = arith.subf %9, %3 : vector<16x128xf32>
    %cst_3 = arith.constant 0.000000e+00 : f32
    %11 = vector.broadcast %cst_3 : f32 to vector<16x128xf32>
    %12 = arith.maximumf %10, %11 : vector<16x128xf32>
    %13 = arith.addf %12, %8 : vector<16x128xf32>
    %c0_4 = arith.constant 0 : index
    %c0_5 = arith.constant 0 : index
    %14 = vector.load %arg3[%c0_4, %c0_5] : memref<8x128xf32, #tpu.memory_space<vmem>>, vector<8x128xf32>
    %15 = vector.shape_cast %13 : vector<16x128xf32> to vector<2x8x128xf32>
    %cst_6 = arith.constant dense<0.000000e+00> : vector<8x128xf32>
    %16 = vector.multi_reduction <add>, %15, %cst_6 [0] : vector<2x8x128xf32> to vector<8x128xf32>
    %17 = arith.addf %14, %16 : vector<8x128xf32>
    %c0_7 = arith.constant 0 : index
    %c0_8 = arith.constant 0 : index
    %18 = vector.load %arg3[%c0_7, %c0_8] : memref<8x128xf32, #tpu.memory_space<vmem>>, vector<8x128xf32>
    tpu.vector_store %arg3[%c0_7, %c0_8], %17 {strides = array<i32>} : memref<8x128xf32, #tpu.memory_space<vmem>>, vector<8x128xf32>,
    return
  }
  func.func @transform_0(%arg0: i32, %arg1: i32) -> (i32, i32) {
    %c1_i32 = arith.constant 1 : i32
    %0 = arith.muli %arg0, %c1_i32 : i32
    %1 = arith.addi %0, %arg1 : i32
    %c0_i32 = arith.constant 0 : i32
    %c0_i32_0 = arith.constant 0 : i32
    return %1, %c0_i32 : i32, i32
  }
  func.func @transform_1(%arg0: i32, %arg1: i32) -> (i32, i32) {
    %c0_i32 = arith.constant 0 : i32
    %c0_i32_0 = arith.constant 0 : i32
    return %arg0, %c0_i32 : i32, i32
  }
}

</mosaic_0001>

<llo_original>
// kernel: tpu_custom_call.1
$region0: #{tpu_custom_call.1}
  #allocation0 [shape = 'u32[]', space=smem, size = 0x4, offset = 0x4, fixed_abs, tag = 'smem constant byte address 0x4 - core index']
  #allocation1 [shape = 'u32[144,128]{1,0:T(1,128)}', space=vmem, size = 0x12000, scoped, tag = 'internal scratch']
  %s0 = inlined_call_operand.hbm [shape: f32[16,128], index: 0, kind: input, shape index: {}]
  %s1 = inlined_call_operand.hbm [shape: f32[8,128], index: 1, kind: output, shape index: {}]
  %s2 = sld [smem:[#allocation0]]
  $region22: #{tpu_custom_call.1} parent=0
    _
  %s4 = ssub.s32 1, %s2
  %s5 = scalar_select 0, %s4, %s2
  $region1: #{tpu_custom_call.1} parent=0
    #allocation2 [shape = 'u8[8192]{0}', space=vmem, size = 0x2000, scoped, tag = 'input window, operand 0, single buffered']
    #allocation3 [shape = 's32[1]{0}', space=sflag, size = 0x4, scoped, tag = 'scoped memory for tpu_custom_call.1']
    #allocation4 [shape = 's32[1]{0}', space=sflag, size = 0x4, scoped, tag = 'scoped memory for tpu_custom_call.1']
    #allocation5 [shape = 'u8[4096]{0}', space=vmem, size = 0x1000, scoped, tag = 'output window, operand 0, single buffered']
    %6 = vsyncpa [#allocation3], 0
    %7 = vsyncpa [#allocation4], 0
    // Predicated region
    $region2: #{tpu_custom_call.1} parent=1 // pred_check
      _
    $region3: #{tpu_custom_call.1} parent=1 // pred_check_branch
      %9 = sbr.rel (0) target = $region5
    $region4: #{tpu_custom_call.1} parent=1 // pred_region
      %s10 = sadd.s32 0, 0
      %s11 = smul.u32 2, %s10
      %s13 = ssub.s32 256, 256
      %14 = vsyncadd [#allocation3], %s13
      %s15 = smul.addr %s11, 128
      %s16 = scalar_lea.hbm %s0, %s15
      %s17 = sshll.u32 [#allocation2], 4
      %s18 = int_to_ptr.vmem [resolvable:$true] %s17
      %23 = dma.hbm_to_vmem [thread:$0]  %s16, 256, %s18, [#allocation3], 128, 128, 8
    $region5: #{tpu_custom_call.1} parent=1 // pred_fallthru
      _
    // Predicated region
    $region6: #{tpu_custom_call.1} parent=1 // pred_check
      _
    $region7: #{tpu_custom_call.1} parent=1 // pred_check_branch
      %25 = sbr.rel (0) target = $region9
    $region8: #{tpu_custom_call.1} parent=1 // pred_region
      %26 = dma.done [#allocation3], 256
    $region9: #{tpu_custom_call.1} parent=1 // pred_fallthru
      _
    %s27 = sadd.s32 0, 0
    %s28 = smul.u32 2, %s27
    %p29 = scmp.eq.s32.totalorder 0, 0
    // Predicated region
    $region10: #{tpu_custom_call.1} parent=1 // pred_check
      %p30 = pneg %p29
    $region11: #{tpu_custom_call.1} parent=1 // pred_check_branch
      %32 = sbr.rel (%p30) target = $region13
    $region12: #{tpu_custom_call.1} parent=1 // pred_region
      %33 = vst [vmem:[#allocation5] sm:$0xff] 0.0
    $region13: #{tpu_custom_call.1} parent=1 // pred_fallthru
      _
    %v34 = vld [vmem:[#allocation2] sm:$0xff]
    %v35 = vld [vmem:[#allocation2 + $0x8] sm:$0xff]
    %v36 = vand.u32 2147483647, %v34
    %v37 = vand.u32 2147483647, %v35
    %v38 = vsub.f32 0.0, %v36
    %v39 = vsub.f32 0.0, %v37
    %v40 = vmul.f32 %v38, 1.442695
    %v41 = vpow.pop %v40
    %v42 = vmul.f32 %v39, 1.442695
    %v43 = vpow.pop %v42
    %v44 = vadd.f32 %v41, 1.0
    %v45 = vlog2.pop %v44
    %v46 = vmul.f32 %v45, 0.6931472
    %v47 = vmul.f32 -0.5, %v41
    %v48 = vadd.f32 %v47, 1.0
    %v49 = vmul.f32 %v48, %v41
    %v50 = vand.u32 2147483647, %v41
    %vm51 = vcmp.lt.f32.partialorder %v50, 0.0004427343
    %v52 = vsel %vm51, %v49, %v46
    %v53 = vadd.f32 %v43, 1.0
    %v54 = vlog2.pop %v53
    %v55 = vmul.f32 %v54, 0.6931472
    %v56 = vmul.f32 -0.5, %v43
    %v57 = vadd.f32 %v56, 1.0
    %v58 = vmul.f32 %v57, %v43
    %v59 = vand.u32 2147483647, %v43
    %vm60 = vcmp.lt.f32.partialorder %v59, 0.0004427343
    %v61 = vsel %vm60, %v58, %v55
    %v62 = vsub.f32 0.0, %v34
    %v63 = vsub.f32 0.0, %v35
    %v64 = vmax.f32 %v62, 0.0
    %v65 = vmax.f32 %v63, 0.0
    %v66 = vadd.f32 %v64, %v52
    %v67 = vadd.f32 %v65, %v61
    %v68 = vld [vmem:[#allocation5] sm:$0xff]
    %v69 = vadd.f32 %v66, %v67
    %v70 = vadd.f32 %v68, %v69
    %71 = vst [vmem:[#allocation5] sm:$0xff] %v70
    // Predicated region
    $region14: #{tpu_custom_call.1} parent=1 // pred_check
      _
    $region15: #{tpu_custom_call.1} parent=1 // pred_check_branch
      %73 = sbr.rel (0) target = $region17
    $region16: #{tpu_custom_call.1} parent=1 // pred_region
      %s75 = ssub.s32 128, 128
      %76 = vsyncadd [#allocation4], %s75
      %s78 = sshll.u32 [#allocation5], 4
      %s79 = int_to_ptr.vmem [resolvable:$true] %s78
      %81 = dma.vmem_to_hbm [thread:$0]  %s79, 128, %s1, [#allocation4]
    $region17: #{tpu_custom_call.1} parent=1 // pred_fallthru
      _
    // Predicated region
    $region18: #{tpu_custom_call.1} parent=1 // pred_check
      _
    $region19: #{tpu_custom_call.1} parent=1 // pred_check_branch
      %83 = sbr.rel (0) target = $region21
    $region20: #{tpu_custom_call.1} parent=1 // pred_region
      %84 = dma.done [#allocation4], 128
    $region21: #{tpu_custom_call.1} parent=1 // pred_fallthru
      _
    %85 = vsyncpa [#allocation3], 1
    %86 = vsyncpa [#allocation4], 1

</llo_original>
